<compile_context>
chip_gen: v6e
topology: v6e:2x2x1
jax: 0.10.0
libtpu: 0.0.40
codegen_flags: <defaults>
</compile_context>

<pallas_src>
import functools

import jax
import jax.numpy as jnp
from jax.experimental import pallas as pl
from jax.experimental.pallas import tpu as pltpu

BN_EPS = 1e-5


def _round_up(x, m):
    return ((x + m - 1) // m) * m


def _vmem_budget_bytes():
    """Generation-aware VMEM budget (used both for tile sizing and vmem_limit_bytes)."""
    phys = None
    try:
        info = pltpu.get_tpu_info()
        phys = getattr(info, "vmem_capacity_bytes", None)
    except Exception:
        phys = None
    if not phys:
        phys = 64 * 1024 * 1024  # conservative: v7x has 64 MiB/TC; v5e/v6e have 128 MiB
    return int(min(phys * 3 // 4, 96 * 1024 * 1024))


def _pick_tile_l(hw, c_in, c_out, n_batch, vmem_budget,
                 target_step_bytes=2 * 1024 * 1024, min_steps=8):
    """Spatial tile (lane count): a multiple of 128, sized so one grid step moves
    ~target_step_bytes of HBM traffic, capped by the double-buffered VMEM budget and
    shrunk (down to 128) to keep >= min_steps grid steps for pipelining."""
    bytes_per_lane = 4 * (c_in + 2 * c_out)            # x read + y write (+ headroom)
    t = (target_step_bytes // bytes_per_lane) // 128 * 128
    t = max(128, min(t, _round_up(hw, 128)))
    per_lane_vmem = 8 * (c_in + c_out)                 # 2 buffers * 4 B * (in + out) per lane
    max_t_vmem = max(128, (vmem_budget // 3) // per_lane_vmem // 128 * 128)
    t = min(t, max_t_vmem)
    while t > 128 and n_batch * pl.cdiv(hw, t) < min_steps:
        t = max(128, (t // 2) // 128 * 128)
    return int(t)


def _stats_kernel(x_ref, w_ref, b_ref, sum_ref, sq_ref, *, hw, tile_l, need_mask):
    """Pass 1: z = relu(W @ x + b); accumulate per-batch per-channel sum(z), sum(z*z).

    x_ref:   (C_in, TILE_L)   channels on sublanes / flat spatial on lanes
    w_ref:   (C_out, C_in)
    b_ref:   (C_out, 1)
    sum_ref: (C_out, 1)       resident per-batch accumulators (same block over the l axis)
    sq_ref:  (C_out, 1)
    """
    l = pl.program_id(1)

    @pl.when(l == 0)
    def _init():
        sum_ref[...] = jnp.zeros_like(sum_ref)
        sq_ref[...] = jnp.zeros_like(sq_ref)

    z = jnp.dot(w_ref[...], x_ref[...], preferred_element_type=jnp.float32)
    z = jnp.maximum(z + b_ref[...], 0.0)
    if need_mask:
        # Ragged last tile: zero out lanes past the true H*W so stats stay exact.
        lane = jax.lax.broadcasted_iota(jnp.int32, (1, tile_l), 1)
        z = jnp.where(lane < (hw - l * tile_l), z, 0.0)
    sum_ref[...] += jnp.sum(z, axis=1, keepdims=True)
    sq_ref[...] += jnp.sum(z * z, axis=1, keepdims=True)


def _apply_kernel(x_ref, w_ref, b_ref, scale_ref, shift_ref, o_ref):
    """Pass 2: recompute conv + ReLU, apply BN folded into one scale/shift, lane-dense store.

    Out-of-range lanes of a ragged last tile are never written back to HBM by Pallas,
    so no masking is needed here.
    """
    z = jnp.dot(w_ref[...], x_ref[...], preferred_element_type=jnp.float32)
    z = jnp.maximum(z + b_ref[...], 0.0)
    o_ref[...] = (z * scale_ref[...] + shift_ref[...]).astype(o_ref.dtype)


@functools.partial(jax.jit, static_argnames=("up_scale",))
def up_conv_forward(x_nchw, w_oc_ic, b_conv, gamma, beta, up_scale=2):
    """Forward of up_conv(fan_in, fan_out, up_scale=2) with a fresh module
    (BatchNorm2d in training mode -> batch statistics).

    x_nchw:  (N, C_in, H, W) float32
    w_oc_ic: (C_out, C_in)   = PyTorch conv.weight[:, :, 0, 0]
    b_conv:  (C_out,)
    gamma, beta: (C_out,)    BatchNorm affine params
    returns: (N, C_out, H*up_scale, W*up_scale)
    """
    if up_scale <= 1:
        # TODO(synk): up_scale<=1 branch (3x3 strided conv_block) not implemented.
        raise NotImplementedError("up_conv with up_scale <= 1 is not implemented")

    N, C_in, H, W = x_nchw.shape
    C_out = w_oc_ic.shape[0]
    HW = H * W

    vmem_budget = _vmem_budget_bytes()
    tile_l = _pick_tile_l(HW, C_in, C_out, N, vmem_budget)
    num_l = int(pl.cdiv(HW, tile_l))
    grid = (N, num_l)
    need_mask = (HW % tile_l) != 0

    x3 = x_nchw.reshape(N, C_in, HW).astype(jnp.float32)   # free contiguous reshape
    w2 = w_oc_ic.astype(jnp.float32)
    b2 = b_conv.reshape(C_out, 1).astype(jnp.float32)

    x_spec = pl.BlockSpec((None, C_in, tile_l), lambda n, l: (n, 0, l))
    w_spec = pl.BlockSpec((C_out, C_in), lambda n, l: (0, 0))
    c_spec = pl.BlockSpec((C_out, 1), lambda n, l: (0, 0))          # per-channel columns
    s_spec = pl.BlockSpec((None, C_out, 1), lambda n, l: (n, 0, 0))  # per-batch partial stats
    y_spec = pl.BlockSpec((None, C_out, tile_l), lambda n, l: (n, 0, l))

    conv_flops = 2 * N * HW * C_in * C_out

    # ---- pass 1: per-batch per-channel sum / sum-of-squares of relu(conv1x1(x)) ----
    zsum, zsq = pl.pallas_call(
        functools.partial(_stats_kernel, hw=HW, tile_l=tile_l, need_mask=need_mask),
        grid=grid,
        in_specs=[x_spec, w_spec, c_spec],
        out_specs=(s_spec, s_spec),
        out_shape=(jax.ShapeDtypeStruct((N, C_out, 1), jnp.float32),
                   jax.ShapeDtypeStruct((N, C_out, 1), jnp.float32)),
        compiler_params=pltpu.CompilerParams(
            dimension_semantics=("parallel", "arbitrary"),  # reduction axis last
            vmem_limit_bytes=vmem_budget),
        cost_estimate=pl.CostEstimate(
            flops=conv_flops + 4 * N * HW * C_out,
            transcendentals=0,
            bytes_accessed=4 * (N * C_in * HW + C_out * C_in + C_out + 2 * N * C_out)),
    )(x3, w2, b2)

    # ---- fold training-mode BN into one per-channel scale/shift (f32) ----
    cnt = jnp.float32(N * HW)                              # exact count (ragged tiles masked)
    mean = jnp.sum(zsum[:, :, 0], axis=0) / cnt
    var = jnp.maximum(jnp.sum(zsq[:, :, 0], axis=0) / cnt - mean * mean, 0.0)  # biased, like torch
    inv_std = jax.lax.rsqrt(var + BN_EPS)
    scale2 = (gamma * inv_std).reshape(C_out, 1).astype(jnp.float32)
    shift2 = (beta - mean * gamma * inv_std).reshape(C_out, 1).astype(jnp.float32)

    # ---- pass 2: recompute conv, apply folded affine, lane-dense tiled output ----
    y3 = pl.pallas_call(
        _apply_kernel,
        grid=grid,
        in_specs=[x_spec, w_spec, c_spec, c_spec, c_spec],
        out_specs=y_spec,
        out_shape=jax.ShapeDtypeStruct((N, C_out, HW), jnp.float32),
        compiler_params=pltpu.CompilerParams(
            dimension_semantics=("parallel", "parallel"),   # shard across TensorCores
            vmem_limit_bytes=vmem_budget),
        cost_estimate=pl.CostEstimate(
            flops=conv_flops + 3 * N * HW * C_out,
            transcendentals=0,
            bytes_accessed=4 * (N * C_in * HW + N * C_out * HW + C_out * C_in + 3 * C_out)),
    )(x3, w2, b2, scale2, shift2)

    # ---- nearest-neighbour x2 upsample + NCHW view: one fused XLA epilogue ----
    up = up_scale
    y4 = y3.reshape(N, C_out, H, W)
    y6 = jnp.broadcast_to(y4[:, :, :, None, :, None], (N, C_out, H, up, W, up))
    return y6.reshape(N, C_out, H * up, W * up)


def _reference(x_nchw, w_oc_ic, b_conv, gamma, beta, up_scale=2):
    """Pure-JAX reference for correctness checking."""
    z = jnp.einsum("oc,nchw->nohw", w_oc_ic, x_nchw,
                   precision=jax.lax.Precision.HIGHEST)
    z = jnp.maximum(z + b_conv[None, :, None, None], 0.0)
    mean = jnp.mean(z, axis=(0, 2, 3), keepdims=True)
    var = jnp.mean((z - mean) ** 2, axis=(0, 2, 3), keepdims=True)
    z = (z - mean) * jax.lax.rsqrt(var + BN_EPS)
    z = z * gamma[None, :, None, None] + beta[None, :, None, None]
    z = jnp.repeat(jnp.repeat(z, up_scale, axis=2), up_scale, axis=3)
    return z


def _run_case(key, n, c_in, c_out, h, w, up_scale, trivial_affine):
    k_x, k_w, k_b, k_g, k_be = jax.random.split(key, 5)
    x = jax.random.normal(k_x, (n, c_in, h, w), dtype=jnp.float32)
    # Conv2d(c_in, c_out, kernel_size=1) weight: PyTorch shape (C_out, C_in, 1, 1).
    w_pt = jax.random.normal(k_w, (c_out, c_in, 1, 1), dtype=jnp.float32) / jnp.sqrt(c_in)
    wt = w_pt[:, :, 0, 0]
    b = 0.1 * jax.random.normal(k_b, (c_out,), dtype=jnp.float32)
    if trivial_affine:
        gamma = jnp.ones((c_out,), dtype=jnp.float32)   # BatchNorm2d default init
        beta = jnp.zeros((c_out,), dtype=jnp.float32)
    else:
        gamma = 1.0 + 0.1 * jax.random.normal(k_g, (c_out,), dtype=jnp.float32)
        beta = 0.05 * jax.random.normal(k_be, (c_out,), dtype=jnp.float32)

    out = up_conv_forward(x, wt, b, gamma, beta, up_scale=up_scale)
    out = jax.block_until_ready(out)
    assert out.shape == (n, c_out, h * up_scale, w * up_scale), out.shape

    ref = _reference(x, wt, b, gamma, beta, up_scale=up_scale)
    max_err = float(jnp.max(jnp.abs(out - ref)))
    assert jnp.allclose(out, ref, atol=1e-4, rtol=1e-4), f"mismatch, max_err={max_err}"


if __name__ == "__main__":
    key = jax.random.PRNGKey(0)
    k1, k2 = jax.random.split(key, 2)

    # up_conv(fan_in=4, fan_out=8, up_scale=2); fresh module -> BN uses batch statistics.
    _run_case(k1, n=2, c_in=4, c_out=8, h=16, w=16, up_scale=2, trivial_affine=True)

    # Larger spatial extent + non-trivial BN affine: exercises multi-tile grid / tile sizing.
    _run_case(k2, n=1, c_in=3, c_out=16, h=32, w=64, up_scale=2, trivial_affine=False)

    print("KERNEL_OK")
</pallas_src>

<mosaic_0001>
module attributes {stable_mosaic.version = 11 : i64} {
  func.func @_stats_kernel(%arg0: i32, %arg1: i32, %arg2: memref<1x4x128xf32, #tpu.memory_space<vmem>>, %arg3: memref<8x4xf32, #tpu.memory_space<vmem>>, %arg4: memref<8x1xf32, #tpu.memory_space<vmem>>, %arg5: memref<1x8x1xf32, #tpu.memory_space<vmem>>, %arg6: memref<1x8x1xf32, #tpu.memory_space<vmem>>) attributes {dimension_semantics = [#tpu.dimension_semantics<parallel>, #tpu.dimension_semantics<arbitrary>], iteration_bounds = array<i64: 2, 2>, scalar_prefetch = 0 : i64, scratch_operands = 0 : i64, tpu.core_type = #tpu.core_type<tc>, window_params = [{transform_indices = @transform_0, window_bounds = array<i64: 1, 4, 128>}, {pipeline_mode = #tpu.pipeline_mode<synchronous>, transform_indices = @transform_1, window_bounds = array<i64: 8, 4>}, {pipeline_mode = #tpu.pipeline_mode<synchronous>, transform_indices = @transform_2, window_bounds = array<i64: 8, 1>}, {transform_indices = @transform_3, window_bounds = array<i64: 1, 8, 1>}, {transform_indices = @transform_4, window_bounds = array<i64: 1, 8, 1>}]} {
    %c0_i32 = arith.constant 0 : i32
    %0 = arith.cmpi eq, %arg1, %c0_i32 : i32
    %1 = arith.extui %0 : i1 to i32
    %c0_i32_0 = arith.constant 0 : i32
    %2 = arith.cmpi ne, %1, %c0_i32_0 : i32
    scf.if %2 {
      %cst_22 = arith.constant 0.000000e+00 : f32
      %29 = vector.broadcast %cst_22 : f32 to vector<8x1xf32>
      %c0_23 = arith.constant 0 : index
      %c0_24 = arith.constant 0 : index
      %c0_25 = arith.constant 0 : index
      %30 = vector.load %arg5[%c0_23, %c0_24, %c0_25] : memref<1x8x1xf32, #tpu.memory_space<vmem>>, vector<1x8x1xf32>
      %31 = vector.shape_cast %30 : vector<1x8x1xf32> to vector<8x1xf32>
      %32 = vector.shape_cast %29 : vector<8x1xf32> to vector<1x8x1xf32>
      tpu.vector_store %arg5[%c0_23, %c0_24, %c0_25], %32 {strides = array<i32>} : memref<1x8x1xf32, #tpu.memory_space<vmem>>, vector<1x8x1xf32>,
      %cst_26 = arith.constant 0.000000e+00 : f32
      %33 = vector.broadcast %cst_26 : f32 to vector<8x1xf32>
      %c0_27 = arith.constant 0 : index
      %c0_28 = arith.constant 0 : index
      %c0_29 = arith.constant 0 : index
      %34 = vector.load %arg6[%c0_27, %c0_28, %c0_29] : memref<1x8x1xf32, #tpu.memory_space<vmem>>, vector<1x8x1xf32>
      %35 = vector.shape_cast %34 : vector<1x8x1xf32> to vector<8x1xf32>
      %36 = vector.shape_cast %33 : vector<8x1xf32> to vector<1x8x1xf32>
      tpu.vector_store %arg6[%c0_27, %c0_28, %c0_29], %36 {strides = array<i32>} : memref<1x8x1xf32, #tpu.memory_space<vmem>>, vector<1x8x1xf32>,
    } else {
    }
    %c0 = arith.constant 0 : index
    %c0_1 = arith.constant 0 : index
    %3 = vector.load %arg3[%c0, %c0_1] : memref<8x4xf32, #tpu.memory_space<vmem>>, vector<8x4xf32>
    %c0_2 = arith.constant 0 : index
    %c0_3 = arith.constant 0 : index
    %c0_4 = arith.constant 0 : index
    %4 = vector.load %arg2[%c0_2, %c0_3, %c0_4] : memref<1x4x128xf32, #tpu.memory_space<vmem>>, vector<1x4x128xf32>
    %5 = vector.shape_cast %4 : vector<1x4x128xf32> to vector<4x128xf32>
    %cst = arith.constant dense<0.000000e+00> : vector<8x128xf32>
    %6 = tpu.matmul %3, %5, %cst {dimension_numbers = #tpu.dot_dimension_numbers<[1], [0], [0], [1], [0, 0, 1, 1], [], []>} : vector<8x4xf32>, vector<4x128xf32>, vector<8x128xf32> -> vector<8x128xf32>
    %c0_5 = arith.constant 0 : index
    %c0_6 = arith.constant 0 : index
    %7 = vector.load %arg4[%c0_5, %c0_6] : memref<8x1xf32, #tpu.memory_space<vmem>>, vector<8x1xf32>
    %8 = vector.broadcast %7 : vector<8x1xf32> to vector<8x128xf32>
    %9 = arith.addf %6, %8 : vector<8x128xf32>
    %cst_7 = arith.constant 0.000000e+00 : f32
    %10 = vector.broadcast %cst_7 : f32 to vector<8x128xf32>
    %11 = arith.maximumf %9, %10 : vector<8x128xf32>
    %c0_8 = arith.constant 0 : index
    %c0_9 = arith.constant 0 : index
    %c0_10 = arith.constant 0 : index
    %12 = vector.load %arg5[%c0_8, %c0_9, %c0_10] : memref<1x8x1xf32, #tpu.memory_space<vmem>>, vector<1x8x1xf32>
    %13 = vector.shape_cast %12 : vector<1x8x1xf32> to vector<8x1xf32>
    %cst_11 = arith.constant dense<0.000000e+00> : vector<8xf32>
    %14 = vector.multi_reduction <add>, %11, %cst_11 [1] : vector<8x128xf32> to vector<8xf32>
    %15 = vector.shape_cast %14 : vector<8xf32> to vector<8x1xf32>
    %16 = arith.addf %13, %15 : vector<8x1xf32>
    %c0_12 = arith.constant 0 : index
    %c0_13 = arith.constant 0 : index
    %c0_14 = arith.constant 0 : index
    %17 = vector.load %arg5[%c0_12, %c0_13, %c0_14] : memref<1x8x1xf32, #tpu.memory_space<vmem>>, vector<1x8x1xf32>
    %18 = vector.shape_cast %17 : vector<1x8x1xf32> to vector<8x1xf32>
    %19 = vector.shape_cast %16 : vector<8x1xf32> to vector<1x8x1xf32>
    tpu.vector_store %arg5[%c0_12, %c0_13, %c0_14], %19 {strides = array<i32>} : memref<1x8x1xf32, #tpu.memory_space<vmem>>, vector<1x8x1xf32>,
    %c0_15 = arith.constant 0 : index
    %c0_16 = arith.constant 0 : index
    %c0_17 = arith.constant 0 : index
    %20 = vector.load %arg6[%c0_15, %c0_16, %c0_17] : memref<1x8x1xf32, #tpu.memory_space<vmem>>, vector<1x8x1xf32>
    %21 = vector.shape_cast %20 : vector<1x8x1xf32> to vector<8x1xf32>
    %22 = arith.mulf %11, %11 : vector<8x128xf32>
    %cst_18 = arith.constant dense<0.000000e+00> : vector<8xf32>
    %23 = vector.multi_reduction <add>, %22, %cst_18 [1] : vector<8x128xf32> to vector<8xf32>
    %24 = vector.shape_cast %23 : vector<8xf32> to vector<8x1xf32>
    %25 = arith.addf %21, %24 : vector<8x1xf32>
    %c0_19 = arith.constant 0 : index
    %c0_20 = arith.constant 0 : index
    %c0_21 = arith.constant 0 : index
    %26 = vector.load %arg6[%c0_19, %c0_20, %c0_21] : memref<1x8x1xf32, #tpu.memory_space<vmem>>, vector<1x8x1xf32>
    %27 = vector.shape_cast %26 : vector<1x8x1xf32> to vector<8x1xf32>
    %28 = vector.shape_cast %25 : vector<8x1xf32> to vector<1x8x1xf32>
    tpu.vector_store %arg6[%c0_19, %c0_20, %c0_21], %28 {strides = array<i32>} : memref<1x8x1xf32, #tpu.memory_space<vmem>>, vector<1x8x1xf32>,
    return
  }
  func.func @transform_0(%arg0: i32, %arg1: i32) -> (i32, i32, i32) {
    %c0_i32 = arith.constant 0 : i32
    %c0_i32_0 = arith.constant 0 : i32
    return %arg0, %c0_i32, %arg1 : i32, i32, i32
  }
  func.func @transform_1(%arg0: i32, %arg1: i32) -> (i32, i32) {
    %c0_i32 = arith.constant 0 : i32
    %c0_i32_0 = arith.constant 0 : i32
    %c0_i32_1 = arith.constant 0 : i32
    return %c0_i32, %c0_i32_0 : i32, i32
  }
  func.func @transform_2(%arg0: i32, %arg1: i32) -> (i32, i32) {
    %c0_i32 = arith.constant 0 : i32
    %c0_i32_0 = arith.constant 0 : i32
    %c0_i32_1 = arith.constant 0 : i32
    return %c0_i32, %c0_i32_0 : i32, i32
  }
  func.func @transform_3(%arg0: i32, %arg1: i32) -> (i32, i32, i32) {
    %c0_i32 = arith.constant 0 : i32
    %c0_i32_0 = arith.constant 0 : i32
    %c0_i32_1 = arith.constant 0 : i32
    return %arg0, %c0_i32, %c0_i32_0 : i32, i32, i32
  }
  func.func @transform_4(%arg0: i32, %arg1: i32) -> (i32, i32, i32) {
    %c0_i32 = arith.constant 0 : i32
    %c0_i32_0 = arith.constant 0 : i32
    %c0_i32_1 = arith.constant 0 : i32
    return %arg0, %c0_i32, %c0_i32_0 : i32, i32, i32
  }
}

module attributes {stable_mosaic.version = 11 : i64} {
  func.func @_apply_kernel(%arg0: i32, %arg1: i32, %arg2: memref<1x4x128xf32, #tpu.memory_space<vmem>>, %arg3: memref<8x4xf32, #tpu.memory_space<vmem>>, %arg4: memref<8x1xf32, #tpu.memory_space<vmem>>, %arg5: memref<8x1xf32, #tpu.memory_space<vmem>>, %arg6: memref<8x1xf32, #tpu.memory_space<vmem>>, %arg7: memref<1x8x128xf32, #tpu.memory_space<vmem>>) attributes {dimension_semantics = [#tpu.dimension_semantics<parallel>, #tpu.dimension_semantics<parallel>], iteration_bounds = array<i64: 2, 2>, scalar_prefetch = 0 : i64, scratch_operands = 0 : i64, tpu.core_type = #tpu.core_type<tc>, window_params = [{transform_indices = @transform_0, window_bounds = array<i64: 1, 4, 128>}, {pipeline_mode = #tpu.pipeline_mode<synchronous>, transform_indices = @transform_1, window_bounds = array<i64: 8, 4>}, {pipeline_mode = #tpu.pipeline_mode<synchronous>, transform_indices = @transform_2, window_bounds = array<i64: 8, 1>}, {pipeline_mode = #tpu.pipeline_mode<synchronous>, transform_indices = @transform_3, window_bounds = array<i64: 8, 1>}, {pipeline_mode = #tpu.pipeline_mode<synchronous>, transform_indices = @transform_4, window_bounds = array<i64: 8, 1>}, {transform_indices = @transform_5, window_bounds = array<i64: 1, 8, 128>}]} {
    %c0 = arith.constant 0 : index
    %c0_0 = arith.constant 0 : index
    %0 = vector.load %arg3[%c0, %c0_0] : memref<8x4xf32, #tpu.memory_space<vmem>>, vector<8x4xf32>
    %c0_1 = arith.constant 0 : index
    %c0_2 = arith.constant 0 : index
    %c0_3 = arith.constant 0 : index
    %1 = vector.load %arg2[%c0_1, %c0_2, %c0_3] : memref<1x4x128xf32, #tpu.memory_space<vmem>>, vector<1x4x128xf32>
    %2 = vector.shape_cast %1 : vector<1x4x128xf32> to vector<4x128xf32>
    %cst = arith.constant dense<0.000000e+00> : vector<8x128xf32>
    %3 = tpu.matmul %0, %2, %cst {dimension_numbers = #tpu.dot_dimension_numbers<[1], [0], [0], [1], [0, 0, 1, 1], [], []>} : vector<8x4xf32>, vector<4x128xf32>, vector<8x128xf32> -> vector<8x128xf32>
    %c0_4 = arith.constant 0 : index
    %c0_5 = arith.constant 0 : index
    %4 = vector.load %arg4[%c0_4, %c0_5] : memref<8x1xf32, #tpu.memory_space<vmem>>, vector<8x1xf32>
    %5 = vector.broadcast %4 : vector<8x1xf32> to vector<8x128xf32>
    %6 = arith.addf %3, %5 : vector<8x128xf32>
    %cst_6 = arith.constant 0.000000e+00 : f32
    %7 = vector.broadcast %cst_6 : f32 to vector<8x128xf32>
    %8 = arith.maximumf %6, %7 : vector<8x128xf32>
    %c0_7 = arith.constant 0 : index
    %c0_8 = arith.constant 0 : index
    %9 = vector.load %arg5[%c0_7, %c0_8] : memref<8x1xf32, #tpu.memory_space<vmem>>, vector<8x1xf32>
    %10 = vector.broadcast %9 : vector<8x1xf32> to vector<8x128xf32>
    %11 = arith.mulf %8, %10 : vector<8x128xf32>
    %c0_9 = arith.constant 0 : index
    %c0_10 = arith.constant 0 : index
    %12 = vector.load %arg6[%c0_9, %c0_10] : memref<8x1xf32, #tpu.memory_space<vmem>>, vector<8x1xf32>
    %13 = vector.broadcast %12 : vector<8x1xf32> to vector<8x128xf32>
    %14 = arith.addf %11, %13 : vector<8x128xf32>
    %c0_11 = arith.constant 0 : index
    %c0_12 = arith.constant 0 : index
    %c0_13 = arith.constant 0 : index
    %15 = vector.load %arg7[%c0_11, %c0_12, %c0_13] : memref<1x8x128xf32, #tpu.memory_space<vmem>>, vector<1x8x128xf32>
    %16 = vector.shape_cast %15 : vector<1x8x128xf32> to vector<8x128xf32>
    %17 = vector.shape_cast %14 : vector<8x128xf32> to vector<1x8x128xf32>
    tpu.vector_store %arg7[%c0_11, %c0_12, %c0_13], %17 {strides = array<i32>} : memref<1x8x128xf32, #tpu.memory_space<vmem>>, vector<1x8x128xf32>,
    return
  }
  func.func @transform_0(%arg0: i32, %arg1: i32) -> (i32, i32, i32) {
    %c0_i32 = arith.constant 0 : i32
    %c0_i32_0 = arith.constant 0 : i32
    return %arg0, %c0_i32, %arg1 : i32, i32, i32
  }
  func.func @transform_1(%arg0: i32, %arg1: i32) -> (i32, i32) {
    %c0_i32 = arith.constant 0 : i32
    %c0_i32_0 = arith.constant 0 : i32
    %c0_i32_1 = arith.constant 0 : i32
    return %c0_i32, %c0_i32_0 : i32, i32
  }
  func.func @transform_2(%arg0: i32, %arg1: i32) -> (i32, i32) {
    %c0_i32 = arith.constant 0 : i32
    %c0_i32_0 = arith.constant 0 : i32
    %c0_i32_1 = arith.constant 0 : i32
    return %c0_i32, %c0_i32_0 : i32, i32
  }
  func.func @transform_3(%arg0: i32, %arg1: i32) -> (i32, i32) {
    %c0_i32 = arith.constant 0 : i32
    %c0_i32_0 = arith.constant 0 : i32
    %c0_i32_1 = arith.constant 0 : i32
    return %c0_i32, %c0_i32_0 : i32, i32
  }
  func.func @transform_4(%arg0: i32, %arg1: i32) -> (i32, i32) {
    %c0_i32 = arith.constant 0 : i32
    %c0_i32_0 = arith.constant 0 : i32
    %c0_i32_1 = arith.constant 0 : i32
    return %c0_i32, %c0_i32_0 : i32, i32
  }
  func.func @transform_5(%arg0: i32, %arg1: i32) -> (i32, i32, i32) {
    %c0_i32 = arith.constant 0 : i32
    %c0_i32_0 = arith.constant 0 : i32
    return %arg0, %c0_i32, %arg1 : i32, i32, i32
  }
}

</mosaic_0001>

<llo_original>
// kernel: up_conv_forward.3
$region0: #{up_conv_forward.3}
  #allocation0 [shape = 'u32[]', space=smem, size = 0x4, offset = 0x4, fixed_abs, tag = 'smem constant byte address 0x4 - core index']
  #allocation1 [shape = 'u32[144,128]{1,0:T(1,128)}', space=vmem, size = 0x12000, scoped, tag = 'internal scratch']
  %s0 = inlined_call_operand.vmem [shape: f32[2,4,256], index: 0, kind: input, shape index: {}]
  %s1 = inlined_call_operand.vmem [shape: f32[8,4], index: 1, kind: input, shape index: {}]
  %s2 = inlined_call_operand.vmem [shape: f32[8,1], index: 2, kind: input, shape index: {}]
  %s3 = inlined_call_operand.vmem [shape: f32[8,1], index: 3, kind: input, shape index: {}]
  %s4 = inlined_call_operand.vmem [shape: f32[8,1], index: 4, kind: input, shape index: {}]
  %s5 = inlined_call_operand.vmem [shape: f32[2,8,256], index: 5, kind: output, shape index: {}]
  %s6 = sld [smem:[#allocation0]]
  $region53: #{up_conv_forward.3} parent=0
    _
  %s8 = ssub.s32 1, %s6
  %s9 = scalar_select 0, %s8, %s6
  loop: start=0, step=1, limit=6
  $region2: #{up_conv_forward.3} parent=0 // loop_pre_header
    _
  $region3: #{up_conv_forward.3} parent=0 // loop_header
    %s11 = sphi 0, %s15
    %p12 = scmp.ge.s32.totalorder %s11, 6
    %s18 = sphi 0, %s30
    %s19 = sphi 0, %s26
    %s20 = sphi 0, %s18
    %s21 = sphi 0, %s19
    %s22 = sphi 0, %s20
    %s23 = sphi 0, %s21
    %s35 = sphi 0, %s37
    %s38 = sphi 0, %s35
    %s39 = sphi 0, %s38
    %s55 = sphi 0, %s39
    %s59 = sphi 0, %s59
    %s61 = sphi 0, %s59
    %s62 = sphi 0, %s61
    %s76 = sphi 0, %s62
    %s80 = sphi 0, %s80
    %s82 = sphi 0, %s80
    %s83 = sphi 0, %s82
    %s97 = sphi 0, %s83
    %s101 = sphi 0, %s101
    %s103 = sphi 0, %s101
    %s104 = sphi 0, %s103
    %s118 = sphi 0, %s104
    %s122 = sphi 0, %s122
    %s124 = sphi 0, %s122
    %s125 = sphi 0, %s124
    %s139 = sphi 0, %s125
    %s147 = sphi 0, %s149
    %s150 = sphi 0, %s147
    %s151 = sphi 0, %s150
    %s167 = sphi 0, %s151
  $region4: #{up_conv_forward.3} parent=0 // loop_header_branch
    %14 = sbr.rel (%p12) target = $region8
  $region5: #{up_conv_forward.3} parent=0 // loop_body
    %s16 = ssub.s32 %s11, 1
    %s17 = ssub.s32 %s11, 2
    %s24 = sadd.s32 1, %s19
    %p25 = scmp.ge.s32.totalorder %s24, 2
    %s26 = scalar_select %p25, 0, %s24
    %s27 = sadd.s32 1, %s18
    %s28 = scalar_select %p25, %s27, %s18
    %p29 = scmp.ge.s32.totalorder %s28, 2
    %s30 = scalar_select %p29, 0, %s28
    %s31 = ssub.s32 %s18, %s30
    %s32 = ssub.s32 %s19, %s26
    %s33 = sor.u32 %s31, %s32
    %p34 = scmp.eq.s32.totalorder %s33, 0
    %s36 = sadd.s32 %s35, 1
    %s37 = scalar_select %p34, %s35, %s36
    %p40 = pneg %p34
    %p41 = scmp.eq.s32.totalorder %s11, 3
    %p42 = por %p40, %p41
    %p43 = scmp.ne.s32.totalorder %s35, %s38
    %p44 = scmp.eq.s32.totalorder %s11, 0
    %p45 = por %p43, %p44
    %p46 = scmp.ne.s32.totalorder %s35, %s38
    %p47 = scmp.eq.s32.totalorder %s16, 3
    %p48 = por %p46, %p47
    %p49 = scmp.ne.s32.totalorder %s38, %s39
    %p50 = scmp.eq.s32.totalorder %s16, 0
    %p51 = por %p49, %p50
    %p52 = scmp.ne.s32.totalorder %s38, %s39
    %p53 = scmp.eq.s32.totalorder %s17, 3
    %p54 = por %p52, %p53
    %p56 = scmp.ne.s32.totalorder %s39, %s55
    %p57 = scmp.eq.s32.totalorder %s17, 0
    %p58 = por %p56, %p57
    %s60 = sadd.s32 %s59, 1
    %p63 = scmp.eq.s32.totalorder %s11, 3
    %p64 = scmp.ne.s32.totalorder %s59, %s61
    %p65 = scmp.eq.s32.totalorder %s11, 0
    %p66 = por %p64, %p65
    %p67 = scmp.ne.s32.totalorder %s59, %s61
    %p68 = scmp.eq.s32.totalorder %s16, 3
    %p69 = por %p67, %p68
    %p70 = scmp.ne.s32.totalorder %s61, %s62
    %p71 = scmp.eq.s32.totalorder %s16, 0
    %p72 = por %p70, %p71
    %p73 = scmp.ne.s32.totalorder %s61, %s62
    %p74 = scmp.eq.s32.totalorder %s17, 3
    %p75 = por %p73, %p74
    %p77 = scmp.ne.s32.totalorder %s62, %s76
    %p78 = scmp.eq.s32.totalorder %s17, 0
    %p79 = por %p77, %p78
    %s81 = sadd.s32 %s80, 1
    %p84 = scmp.eq.s32.totalorder %s11, 3
    %p85 = scmp.ne.s32.totalorder %s80, %s82
    %p86 = scmp.eq.s32.totalorder %s11, 0
    %p87 = por %p85, %p86
    %p88 = scmp.ne.s32.totalorder %s80, %s82
    %p89 = scmp.eq.s32.totalorder %s16, 3
    %p90 = por %p88, %p89
    %p91 = scmp.ne.s32.totalorder %s82, %s83
    %p92 = scmp.eq.s32.totalorder %s16, 0
    %p93 = por %p91, %p92
    %p94 = scmp.ne.s32.totalorder %s82, %s83
    %p95 = scmp.eq.s32.totalorder %s17, 3
    %p96 = por %p94, %p95
    %p98 = scmp.ne.s32.totalorder %s83, %s97
    %p99 = scmp.eq.s32.totalorder %s17, 0
    %p100 = por %p98, %p99
    %s102 = sadd.s32 %s101, 1
    %p105 = scmp.eq.s32.totalorder %s11, 3
    %p106 = scmp.ne.s32.totalorder %s101, %s103
    %p107 = scmp.eq.s32.totalorder %s11, 0
    %p108 = por %p106, %p107
    %p109 = scmp.ne.s32.totalorder %s101, %s103
    %p110 = scmp.eq.s32.totalorder %s16, 3
    %p111 = por %p109, %p110
    %p112 = scmp.ne.s32.totalorder %s103, %s104
    %p113 = scmp.eq.s32.totalorder %s16, 0
    %p114 = por %p112, %p113
    %p115 = scmp.ne.s32.totalorder %s103, %s104
    %p116 = scmp.eq.s32.totalorder %s17, 3
    %p117 = por %p115, %p116
    %p119 = scmp.ne.s32.totalorder %s104, %s118
    %p120 = scmp.eq.s32.totalorder %s17, 0
    %p121 = por %p119, %p120
    %s123 = sadd.s32 %s122, 1
    %p126 = scmp.eq.s32.totalorder %s11, 3
    %p127 = scmp.ne.s32.totalorder %s122, %s124
    %p128 = scmp.eq.s32.totalorder %s11, 0
    %p129 = por %p127, %p128
    %p130 = scmp.ne.s32.totalorder %s122, %s124
    %p131 = scmp.eq.s32.totalorder %s16, 3
    %p132 = por %p130, %p131
    %p133 = scmp.ne.s32.totalorder %s124, %s125
    %p134 = scmp.eq.s32.totalorder %s16, 0
    %p135 = por %p133, %p134
    %p136 = scmp.ne.s32.totalorder %s124, %s125
    %p137 = scmp.eq.s32.totalorder %s17, 3
    %p138 = por %p136, %p137
    %p140 = scmp.ne.s32.totalorder %s125, %s139
    %p141 = scmp.eq.s32.totalorder %s17, 0
    %p142 = por %p140, %p141
    %s143 = ssub.s32 %s18, %s30
    %s144 = ssub.s32 %s19, %s26
    %s145 = sor.u32 %s143, %s144
    %p146 = scmp.eq.s32.totalorder %s145, 0
    %s148 = sadd.s32 %s147, 1
    %s149 = scalar_select %p146, %s147, %s148
    %p152 = pneg %p146
    %p153 = scmp.eq.s32.totalorder %s11, 3
    %p154 = por %p152, %p153
    %p155 = scmp.ne.s32.totalorder %s147, %s150
    %p156 = scmp.eq.s32.totalorder %s11, 0
    %p157 = por %p155, %p156
    %p158 = scmp.ne.s32.totalorder %s147, %s150
    %p159 = scmp.eq.s32.totalorder %s16, 3
    %p160 = por %p158, %p159
    %p161 = scmp.ne.s32.totalorder %s150, %s151
    %p162 = scmp.eq.s32.totalorder %s16, 0
    %p163 = por %p161, %p162
    %p164 = scmp.ne.s32.totalorder %s150, %s151
    %p165 = scmp.eq.s32.totalorder %s17, 3
    %p166 = por %p164, %p165
    %p168 = scmp.ne.s32.totalorder %s151, %s167
    %p169 = scmp.eq.s32.totalorder %s17, 0
    %p170 = por %p168, %p169
    %p171 = scmp.le.s32.totalorder 1, %s11
    %p172 = scmp.lt.s32.totalorder %s11, 5
    %p173 = pnand %p171, %p172
    %p174 = pneg %p173
    // Predicated region
    $region9: #{up_conv_forward.3} parent=5 // pred_check
      _
    $region10: #{up_conv_forward.3} parent=5 // pred_check_branch
      %176 = sbr.rel (%p173) target = $region12
    $region11: #{up_conv_forward.3} parent=5 // pred_region
      %s177 = ssub.s32 %s11, 1
      // Predicated region
      $region13: #{up_conv_forward.3} parent=11 // pred_check
        %p178 = pneg %p72
      $region14: #{up_conv_forward.3} parent=11 // pred_check_branch
        %180 = sbr.rel (%p178) target = $region16
      $region15: #{up_conv_forward.3} parent=11 // pred_region
        _
      $region16: #{up_conv_forward.3} parent=11 // pred_fallthru
        _
      // Predicated region
      $region17: #{up_conv_forward.3} parent=11 // pred_check
        %p181 = pneg %p93
      $region18: #{up_conv_forward.3} parent=11 // pred_check_branch
        %183 = sbr.rel (%p181) target = $region20
      $region19: #{up_conv_forward.3} parent=11 // pred_region
        _
      $region20: #{up_conv_forward.3} parent=11 // pred_fallthru
        _
      // Predicated region
      $region21: #{up_conv_forward.3} parent=11 // pred_check
        %p184 = pneg %p114
      $region22: #{up_conv_forward.3} parent=11 // pred_check_branch
        %186 = sbr.rel (%p184) target = $region24
      $region23: #{up_conv_forward.3} parent=11 // pred_region
        _
      $region24: #{up_conv_forward.3} parent=11 // pred_fallthru
        _
      // Predicated region
      $region25: #{up_conv_forward.3} parent=11 // pred_check
        %p187 = pneg %p135
      $region26: #{up_conv_forward.3} parent=11 // pred_check_branch
        %189 = sbr.rel (%p187) target = $region28
      $region27: #{up_conv_forward.3} parent=11 // pred_region
        _
      $region28: #{up_conv_forward.3} parent=11 // pred_fallthru
        _
    $region12: #{up_conv_forward.3} parent=5 // pred_fallthru
      _
    %p190 = scmp.lt.s32.totalorder %s11, 4
    // Predicated region
    $region29: #{up_conv_forward.3} parent=5 // pred_check
      %p191 = pneg %p190
    $region30: #{up_conv_forward.3} parent=5 // pred_check_branch
      %193 = sbr.rel (%p191) target = $region32
    $region31: #{up_conv_forward.3} parent=5 // pred_region
      // Predicated region
      $region33: #{up_conv_forward.3} parent=31 // pred_check
        %p194 = pneg %p45
      $region34: #{up_conv_forward.3} parent=31 // pred_check_branch
        %196 = sbr.rel (%p194) target = $region36
      $region35: #{up_conv_forward.3} parent=31 // pred_region
        %p197 = scmp.lt.s32.totalorder %s18, 1
        %s198 = scalar_select %p197, %s18, 1
        %p199 = scmp.lt.s32.totalorder %s19, 1
        %s200 = scalar_select %p199, %s19, 1
        %s201 = smul.addr %s198, 2
        %s202 = sadd.s32 %s200, %s201
        %s203 = smul.addr %s202, 4
        %s204 = scalar_lea.vmem %s0, %s203
      $region36: #{up_conv_forward.3} parent=31 // pred_fallthru
        _
    $region32: #{up_conv_forward.3} parent=5 // pred_fallthru
      _
    %p205 = scmp.le.s32.totalorder 1, %s11
    %p206 = scmp.lt.s32.totalorder %s11, 5
    %p207 = pnand %p205, %p206
    %p208 = pneg %p207
    // Predicated region
    $region37: #{up_conv_forward.3} parent=5 // pred_check
      _
    $region38: #{up_conv_forward.3} parent=5 // pred_check_branch
      %210 = sbr.rel (%p207) target = $region40
    $region39: #{up_conv_forward.3} parent=5 // pred_region
      %s211 = ssub.s32 %s11, 1
      %p212 = scmp.lt.s32.totalorder %s20, 1
      %s213 = scalar_select %p212, %s20, 1
      %p214 = scmp.lt.s32.totalorder %s21, 1
      %s215 = scalar_select %p214, %s21, 1
      %s216 = smul.addr %s213, 2
      %s217 = sadd.s32 %s215, %s216
      %s218 = smul.addr %s217, 4
      %s219 = scalar_lea.vmem %s0, %s218
      %p220 = pneg %p51
      %p221 = pneg %p48
      %p222 = pneg %p72
      %p223 = pneg %p69
      %p224 = pneg %p93
      %p225 = pneg %p90
      %p226 = pneg %p114
      %p227 = pneg %p111
      %p228 = pneg %p135
      %p229 = pneg %p132
      %p230 = pneg %p163
      %p231 = pneg %p160
      %p232 = scmp.lt.s32.totalorder %s20, 1
      %s233 = scalar_select %p232, %s20, 1
      %p234 = scmp.lt.s32.totalorder %s21, 1
      %s235 = scalar_select %p234, %s21, 1
      %s236 = smul.addr %s233, 2
      %s237 = sadd.s32 %s235, %s236
      %s238 = smul.addr %s237, 8
      %s239 = scalar_lea.vmem %s5, %s238
      %p240 = scmp.lt.s32.totalorder %s20, 1
      %s241 = scalar_select %p240, %s20, 1
      %p242 = scmp.lt.s32.totalorder %s21, 1
      %s243 = scalar_select %p242, %s21, 1
      %s244 = smul.addr %s241, 2
      %s245 = sadd.s32 %s243, %s244
      %s246 = smul.addr %s245, 4
      %s247 = scalar_lea.vmem %s0, %s246
      %p248 = scmp.lt.s32.totalorder %s20, 1
      %s249 = scalar_select %p248, %s20, 1
      %p250 = scmp.lt.s32.totalorder %s21, 1
      %s251 = scalar_select %p250, %s21, 1
      %s252 = smul.addr %s249, 2
      %s253 = sadd.s32 %s251, %s252
      %s254 = smul.addr %s253, 8
      %s255 = scalar_lea.vmem %s5, %s254
      %v256 = vld [vmem:[%s1] sm:$0xff]
      %v257 = vld [vmem:[%s247] sm:$0xf]
      %v258 = vld [vmem:[%s2] sm:$0xff]
      %260 = vset.pattern.permute.xlu0 0
      %261 = vperm.xlu0 %260, %v258
      %v262 = vpop.permute.xlu0 %261
      %vm264 = vcmask 31744
      %v266 = vsel %vm264, %v256, 0
      %vm268 = vcmask 1043456
      %v270 = vsel %vm268, %v257, 0
      %272 = vmatprep.subr.mxu0 0.0
      %273 = vmatpush1.msra.mxu0 0.0
      %274 = vmatprep.subr.mxu0 0.0
      %275 = vmatpush1.msra.mxu0 0.0
      %276 = vmatprep.subr.mxu0 0.0
      %277 = vmatpush1.msra.mxu0 0.0
      %278 = vmatprep.subr.mxu0 0.0
      %279 = vmatpush1.msra.mxu0 0.0
      %280 = vmatprep.subr.mxu0 0.0
      %281 = vmatpush1.msra.mxu0 0.0
      %282 = vmatprep.subr.mxu0 0.0
      %283 = vmatpush1.msra.mxu0 0.0
      %284 = vmatprep.subr.mxu0 0.0
      %285 = vmatpush1.msra.mxu0 0.0
      %286 = vmatprep.subr.mxu0 0.0
      %287 = vmatpush1.msra.mxu0 0.0
      %288 = vmatprep.subr.mxu0 0.0
      %289 = vmatpush1.msra.mxu0 0.0
      %290 = vmatprep.subr.mxu0 0.0
      %291 = vmatpush1.msra.mxu0 0.0
      %292 = vmatprep.subr.mxu0 0.0
      %293 = vmatpush1.msra.mxu0 0.0
      %294 = vmatprep.subr.mxu0 0.0
      %295 = vmatpush1.msra.mxu0 0.0
      %296 = vmatprep.subr.mxu0 0.0
      %297 = vmatpush1.msra.mxu0 0.0
      %298 = vmatprep.subr.mxu0 0.0
      %299 = vmatpush1.msra.mxu0 0.0
      %300 = vmatprep.subr.mxu0 0.0
      %301 = vmatpush1.msra.mxu0 0.0
      %302 = vmatprep.subr.mxu0 0.0
      %303 = vmatpush1.msra.mxu0 %v270
      %304 = vmatprep.subr.mxu0 0.0
      %305 = vmatpush2.msra.mxu0 0.0
      %306 = vmatprep.subr.mxu0 0.0
      %307 = vmatpush2.msra.mxu0 0.0
      %308 = vmatprep.subr.mxu0 0.0
      %309 = vmatpush2.msra.mxu0 0.0
      %310 = vmatprep.subr.mxu0 0.0
      %311 = vmatpush2.msra.mxu0 0.0
      %312 = vmatprep.subr.mxu0 0.0
      %313 = vmatpush2.msra.mxu0 0.0
      %314 = vmatprep.subr.mxu0 0.0
      %315 = vmatpush2.msra.mxu0 0.0
      %316 = vmatprep.subr.mxu0 0.0
      %317 = vmatpush2.msra.mxu0 0.0
      %318 = vmatprep.subr.mxu0 0.0
      %319 = vmatpush2.msra.mxu0 0.0
      %320 = vmatprep.subr.mxu0 0.0
      %321 = vmatpush2.msra.mxu0 0.0
      %322 = vmatprep.subr.mxu0 0.0
      %323 = vmatpush2.msra.mxu0 0.0
      %324 = vmatprep.subr.mxu0 0.0
      %325 = vmatpush2.msra.mxu0 0.0
      %326 = vmatprep.subr.mxu0 0.0
      %327 = vmatpush2.msra.mxu0 0.0
      %328 = vmatprep.subr.mxu0 0.0
      %329 = vmatpush2.msra.mxu0 0.0
      %330 = vmatprep.subr.mxu0 0.0
      %331 = vmatpush2.msra.mxu0 0.0
      %332 = vmatprep.subr.mxu0 0.0
      %333 = vmatpush2.msra.mxu0 0.0
      %334 = vmatprep.subr.mxu0 0.0
      %335 = vmatpush2.msra.mxu0 0.0
      %336 = vmatprep.mubr.f32.mxu0 0.0
      %337 = vmatmul.mubr.f32.gmra.mxu0 %v266
      %v338 = vpop.f32.mrf.mxu0
      %v339 = vadd.f32 %v262, %v338
      %v340 = vpop.f32.mrf.mxu0
      %341 = vdwg.mxu0
      %v342 = vmax.f32 %v339, 0.0
      %v343 = vld [vmem:[%s3] sm:$0xff]
      %345 = vset.pattern.permute.xlu0 0
      %346 = vperm.xlu0 %345, %v343
      %v347 = vpop.permute.xlu0 %346
      %v349 = vmul.f32 %v342, %v347
      %v350 = vld [vmem:[%s4] sm:$0xff]
      %352 = vset.pattern.permute.xlu0 0
      %353 = vperm.xlu0 %352, %v350
      %v354 = vpop.permute.xlu0 %353
      %v356 = vadd.f32 %v349, %v354
      %357 = vst [vmem:[%s255] sm:$0xff] %v356
      %p358 = scmp.lt.s32.totalorder %s20, 1
      %s359 = scalar_select %p358, %s20, 1
      %p360 = scmp.lt.s32.totalorder %s21, 1
      %s361 = scalar_select %p360, %s21, 1
      %s362 = smul.addr %s359, 2
      %s363 = sadd.s32 %s361, %s362
      %s364 = smul.addr %s363, 8
      %s365 = scalar_lea.vmem %s5, %s364
      // Predicated region
      $region41: #{up_conv_forward.3} parent=39 // pred_check
        %p366 = pneg %p160
      $region42: #{up_conv_forward.3} parent=39 // pred_check_branch
        %368 = sbr.rel (%p366) target = $region44
      $region43: #{up_conv_forward.3} parent=39 // pred_region
        _
      $region44: #{up_conv_forward.3} parent=39 // pred_fallthru
        _
    $region40: #{up_conv_forward.3} parent=5 // pred_fallthru
      _
    %p369 = scmp.le.s32.totalorder 2, %s11
    // Predicated region
    $region45: #{up_conv_forward.3} parent=5 // pred_check
      %p370 = pneg %p369
    $region46: #{up_conv_forward.3} parent=5 // pred_check_branch
      %372 = sbr.rel (%p370) target = $region48
    $region47: #{up_conv_forward.3} parent=5 // pred_region
      %s373 = ssub.s32 %s11, 2
      // Predicated region
      $region49: #{up_conv_forward.3} parent=47 // pred_check
        %p374 = pneg %p166
      $region50: #{up_conv_forward.3} parent=47 // pred_check_branch
        %376 = sbr.rel (%p374) target = $region52
      $region51: #{up_conv_forward.3} parent=47 // pred_region
        %p377 = scmp.lt.s32.totalorder %s22, 1
        %s378 = scalar_select %p377, %s22, 1
        %p379 = scmp.lt.s32.totalorder %s23, 1
        %s380 = scalar_select %p379, %s23, 1
        %s381 = smul.addr %s378, 2
        %s382 = sadd.s32 %s380, %s381
        %s383 = smul.addr %s382, 8
        %s384 = scalar_lea.vmem %s5, %s383
      $region52: #{up_conv_forward.3} parent=47 // pred_fallthru
        _
    $region48: #{up_conv_forward.3} parent=5 // pred_fallthru
      _
  $region6: #{up_conv_forward.3} parent=0 // loop_footer
    %s15 = sadd.s32 1, %s11
  $region7: #{up_conv_forward.3} parent=0 // loop_footer_branch
    %10 = sbr.rel target = $region3
  $region8: #{up_conv_forward.3} parent=0 // loop_exit
    _

// kernel: up_conv_forward.2
$region0: #{up_conv_forward.2}
  #allocation0 [shape = 'u32[]', space=smem, size = 0x4, offset = 0x4, fixed_abs, tag = 'smem constant byte address 0x4 - core index']
  #allocation1 [shape = 'u32[144,128]{1,0:T(1,128)}', space=vmem, size = 0x12000, scoped, tag = 'internal scratch']
  %s0 = inlined_call_operand.vmem [shape: f32[2,4,256], index: 0, kind: input, shape index: {}]
  %s1 = inlined_call_operand.vmem [shape: f32[8,4], index: 1, kind: input, shape index: {}]
  %s2 = inlined_call_operand.vmem [shape: f32[8,1], index: 2, kind: input, shape index: {}]
  %s3 = inlined_call_operand.vmem [shape: f32[2,8,1], index: 3, kind: output, shape index: {0}]
  %s4 = inlined_call_operand.vmem [shape: f32[2,8,1], index: 4, kind: output, shape index: {1}]
  %5 = xla_tuple %s3, %s4
  %s6 = sld [smem:[#allocation0]]
  $region57: #{up_conv_forward.2} parent=0
    _
  %s8 = ssub.s32 1, %s6
  %s9 = scalar_select 0, %s8, %s6
  loop: start=0, step=1, limit=6
  $region2: #{up_conv_forward.2} parent=0 // loop_pre_header
    _
  $region3: #{up_conv_forward.2} parent=0 // loop_header
    %s11 = sphi 0, %s15
    %p12 = scmp.ge.s32.totalorder %s11, 6
    %s18 = sphi 0, %s30
    %s19 = sphi 0, %s26
    %s20 = sphi 0, %s18
    %s21 = sphi 0, %s19
    %s22 = sphi 0, %s20
    %s23 = sphi 0, %s21
    %s35 = sphi 0, %s37
    %s38 = sphi 0, %s35
    %s39 = sphi 0, %s38
    %s55 = sphi 0, %s39
    %s59 = sphi 0, %s59
    %s61 = sphi 0, %s59
    %s62 = sphi 0, %s61
    %s76 = sphi 0, %s62
    %s80 = sphi 0, %s80
    %s82 = sphi 0, %s80
    %s83 = sphi 0, %s82
    %s97 = sphi 0, %s83
    %s103 = sphi 0, %s105
    %s106 = sphi 0, %s103
    %s107 = sphi 0, %s106
    %s123 = sphi 0, %s107
    %s129 = sphi 0, %s131
    %s132 = sphi 0, %s129
    %s133 = sphi 0, %s132
    %s149 = sphi 0, %s133
  $region4: #{up_conv_forward.2} parent=0 // loop_header_branch
    %14 = sbr.rel (%p12) target = $region8
  $region5: #{up_conv_forward.2} parent=0 // loop_body
    %s16 = ssub.s32 %s11, 1
    %s17 = ssub.s32 %s11, 2
    %s24 = sadd.s32 1, %s19
    %p25 = scmp.ge.s32.totalorder %s24, 2
    %s26 = scalar_select %p25, 0, %s24
    %s27 = sadd.s32 1, %s18
    %s28 = scalar_select %p25, %s27, %s18
    %p29 = scmp.ge.s32.totalorder %s28, 2
    %s30 = scalar_select %p29, 0, %s28
    %s31 = ssub.s32 %s18, %s30
    %s32 = ssub.s32 %s19, %s26
    %s33 = sor.u32 %s31, %s32
    %p34 = scmp.eq.s32.totalorder %s33, 0
    %s36 = sadd.s32 %s35, 1
    %s37 = scalar_select %p34, %s35, %s36
    %p40 = pneg %p34
    %p41 = scmp.eq.s32.totalorder %s11, 3
    %p42 = por %p40, %p41
    %p43 = scmp.ne.s32.totalorder %s35, %s38
    %p44 = scmp.eq.s32.totalorder %s11, 0
    %p45 = por %p43, %p44
    %p46 = scmp.ne.s32.totalorder %s35, %s38
    %p47 = scmp.eq.s32.totalorder %s16, 3
    %p48 = por %p46, %p47
    %p49 = scmp.ne.s32.totalorder %s38, %s39
    %p50 = scmp.eq.s32.totalorder %s16, 0
    %p51 = por %p49, %p50
    %p52 = scmp.ne.s32.totalorder %s38, %s39
    %p53 = scmp.eq.s32.totalorder %s17, 3
    %p54 = por %p52, %p53
    %p56 = scmp.ne.s32.totalorder %s39, %s55
    %p57 = scmp.eq.s32.totalorder %s17, 0
    %p58 = por %p56, %p57
    %s60 = sadd.s32 %s59, 1
    %p63 = scmp.eq.s32.totalorder %s11, 3
    %p64 = scmp.ne.s32.totalorder %s59, %s61
    %p65 = scmp.eq.s32.totalorder %s11, 0
    %p66 = por %p64, %p65
    %p67 = scmp.ne.s32.totalorder %s59, %s61
    %p68 = scmp.eq.s32.totalorder %s16, 3
    %p69 = por %p67, %p68
    %p70 = scmp.ne.s32.totalorder %s61, %s62
    %p71 = scmp.eq.s32.totalorder %s16, 0
    %p72 = por %p70, %p71
    %p73 = scmp.ne.s32.totalorder %s61, %s62
    %p74 = scmp.eq.s32.totalorder %s17, 3
    %p75 = por %p73, %p74
    %p77 = scmp.ne.s32.totalorder %s62, %s76
    %p78 = scmp.eq.s32.totalorder %s17, 0
    %p79 = por %p77, %p78
    %s81 = sadd.s32 %s80, 1
    %p84 = scmp.eq.s32.totalorder %s11, 3
    %p85 = scmp.ne.s32.totalorder %s80, %s82
    %p86 = scmp.eq.s32.totalorder %s11, 0
    %p87 = por %p85, %p86
    %p88 = scmp.ne.s32.totalorder %s80, %s82
    %p89 = scmp.eq.s32.totalorder %s16, 3
    %p90 = por %p88, %p89
    %p91 = scmp.ne.s32.totalorder %s82, %s83
    %p92 = scmp.eq.s32.totalorder %s16, 0
    %p93 = por %p91, %p92
    %p94 = scmp.ne.s32.totalorder %s82, %s83
    %p95 = scmp.eq.s32.totalorder %s17, 3
    %p96 = por %p94, %p95
    %p98 = scmp.ne.s32.totalorder %s83, %s97
    %p99 = scmp.eq.s32.totalorder %s17, 0
    %p100 = por %p98, %p99
    %s101 = ssub.s32 %s18, %s30
    %p102 = scmp.eq.s32.totalorder %s101, 0
    %s104 = sadd.s32 %s103, 1
    %s105 = scalar_select %p102, %s103, %s104
    %p108 = pneg %p102
    %p109 = scmp.eq.s32.totalorder %s11, 3
    %p110 = por %p108, %p109
    %p111 = scmp.ne.s32.totalorder %s103, %s106
    %p112 = scmp.eq.s32.totalorder %s11, 0
    %p113 = por %p111, %p112
    %p114 = scmp.ne.s32.totalorder %s103, %s106
    %p115 = scmp.eq.s32.totalorder %s16, 3
    %p116 = por %p114, %p115
    %p117 = scmp.ne.s32.totalorder %s106, %s107
    %p118 = scmp.eq.s32.totalorder %s16, 0
    %p119 = por %p117, %p118
    %p120 = scmp.ne.s32.totalorder %s106, %s107
    %p121 = scmp.eq.s32.totalorder %s17, 3
    %p122 = por %p120, %p121
    %p124 = scmp.ne.s32.totalorder %s107, %s123
    %p125 = scmp.eq.s32.totalorder %s17, 0
    %p126 = por %p124, %p125
    %s127 = ssub.s32 %s18, %s30
    %p128 = scmp.eq.s32.totalorder %s127, 0
    %s130 = sadd.s32 %s129, 1
    %s131 = scalar_select %p128, %s129, %s130
    %p134 = pneg %p128
    %p135 = scmp.eq.s32.totalorder %s11, 3
    %p136 = por %p134, %p135
    %p137 = scmp.ne.s32.totalorder %s129, %s132
    %p138 = scmp.eq.s32.totalorder %s11, 0
    %p139 = por %p137, %p138
    %p140 = scmp.ne.s32.totalorder %s129, %s132
    %p141 = scmp.eq.s32.totalorder %s16, 3
    %p142 = por %p140, %p141
    %p143 = scmp.ne.s32.totalorder %s132, %s133
    %p144 = scmp.eq.s32.totalorder %s16, 0
    %p145 = por %p143, %p144
    %p146 = scmp.ne.s32.totalorder %s132, %s133
    %p147 = scmp.eq.s32.totalorder %s17, 3
    %p148 = por %p146, %p147
    %p150 = scmp.ne.s32.totalorder %s133, %s149
    %p151 = scmp.eq.s32.totalorder %s17, 0
    %p152 = por %p150, %p151
    %p153 = scmp.le.s32.totalorder 1, %s11
    %p154 = scmp.lt.s32.totalorder %s11, 5
    %p155 = pnand %p153, %p154
    %p156 = pneg %p155
    // Predicated region
    $region9: #{up_conv_forward.2} parent=5 // pred_check
      _
    $region10: #{up_conv_forward.2} parent=5 // pred_check_branch
      %158 = sbr.rel (%p155) target = $region12
    $region11: #{up_conv_forward.2} parent=5 // pred_region
      %s159 = ssub.s32 %s11, 1
      // Predicated region
      $region13: #{up_conv_forward.2} parent=11 // pred_check
        %p160 = pneg %p72
      $region14: #{up_conv_forward.2} parent=11 // pred_check_branch
        %162 = sbr.rel (%p160) target = $region16
      $region15: #{up_conv_forward.2} parent=11 // pred_region
        _
      $region16: #{up_conv_forward.2} parent=11 // pred_fallthru
        _
      // Predicated region
      $region17: #{up_conv_forward.2} parent=11 // pred_check
        %p163 = pneg %p93
      $region18: #{up_conv_forward.2} parent=11 // pred_check_branch
        %165 = sbr.rel (%p163) target = $region20
      $region19: #{up_conv_forward.2} parent=11 // pred_region
        _
      $region20: #{up_conv_forward.2} parent=11 // pred_fallthru
        _
    $region12: #{up_conv_forward.2} parent=5 // pred_fallthru
      _
    %p166 = scmp.lt.s32.totalorder %s11, 4
    // Predicated region
    $region21: #{up_conv_forward.2} parent=5 // pred_check
      %p167 = pneg %p166
    $region22: #{up_conv_forward.2} parent=5 // pred_check_branch
      %169 = sbr.rel (%p167) target = $region24
    $region23: #{up_conv_forward.2} parent=5 // pred_region
      // Predicated region
      $region25: #{up_conv_forward.2} parent=23 // pred_check
        %p170 = pneg %p45
      $region26: #{up_conv_forward.2} parent=23 // pred_check_branch
        %172 = sbr.rel (%p170) target = $region28
      $region27: #{up_conv_forward.2} parent=23 // pred_region
        %p173 = scmp.lt.s32.totalorder %s18, 1
        %s174 = scalar_select %p173, %s18, 1
        %p175 = scmp.lt.s32.totalorder %s19, 1
        %s176 = scalar_select %p175, %s19, 1
        %s177 = smul.addr %s174, 2
        %s178 = sadd.s32 %s176, %s177
        %s179 = smul.addr %s178, 4
        %s180 = scalar_lea.vmem %s0, %s179
      $region28: #{up_conv_forward.2} parent=23 // pred_fallthru
        _
    $region24: #{up_conv_forward.2} parent=5 // pred_fallthru
      _
    %p181 = scmp.le.s32.totalorder 1, %s11
    %p182 = scmp.lt.s32.totalorder %s11, 5
    %p183 = pnand %p181, %p182
    %p184 = pneg %p183
    // Predicated region
    $region29: #{up_conv_forward.2} parent=5 // pred_check
      _
    $region30: #{up_conv_forward.2} parent=5 // pred_check_branch
      %186 = sbr.rel (%p183) target = $region32
    $region31: #{up_conv_forward.2} parent=5 // pred_region
      %s187 = ssub.s32 %s11, 1
      %p188 = scmp.lt.s32.totalorder %s20, 1
      %s189 = scalar_select %p188, %s20, 1
      %p190 = scmp.lt.s32.totalorder %s21, 1
      %s191 = scalar_select %p190, %s21, 1
      %s192 = smul.addr %s189, 2
      %s193 = sadd.s32 %s191, %s192
      %s194 = smul.addr %s193, 4
      %s195 = scalar_lea.vmem %s0, %s194
      %p196 = pneg %p51
      %p197 = pneg %p48
      %p198 = pneg %p72
      %p199 = pneg %p69
      %p200 = pneg %p93
      %p201 = pneg %p90
      %p202 = pneg %p119
      %p203 = pneg %p116
      %p204 = scmp.lt.s32.totalorder %s20, 1
      %s205 = scalar_select %p204, %s20, 1
      %s206 = smul.addr %s205, 8
      %s207 = scalar_lea.vmem %s3, %s206
      %p208 = pneg %p145
      %p209 = pneg %p142
      %p210 = scmp.lt.s32.totalorder %s20, 1
      %s211 = scalar_select %p210, %s20, 1
      %s212 = smul.addr %s211, 8
      %s213 = scalar_lea.vmem %s4, %s212
      %p214 = scmp.lt.s32.totalorder %s20, 1
      %s215 = scalar_select %p214, %s20, 1
      %p216 = scmp.lt.s32.totalorder %s21, 1
      %s217 = scalar_select %p216, %s21, 1
      %s218 = smul.addr %s215, 2
      %s219 = sadd.s32 %s217, %s218
      %s220 = smul.addr %s219, 4
      %s221 = scalar_lea.vmem %s0, %s220
      %p222 = scmp.lt.s32.totalorder %s20, 1
      %s223 = scalar_select %p222, %s20, 1
      %s224 = smul.addr %s223, 8
      %s225 = scalar_lea.vmem %s3, %s224
      %p226 = scmp.lt.s32.totalorder %s20, 1
      %s227 = scalar_select %p226, %s20, 1
      %s228 = smul.addr %s227, 8
      %s229 = scalar_lea.vmem %s4, %s228
      %p230 = scmp.eq.s32.totalorder %s21, 0
      // Predicated region
      $region33: #{up_conv_forward.2} parent=31 // pred_check
        %p231 = pneg %p230
      $region34: #{up_conv_forward.2} parent=31 // pred_check_branch
        %233 = sbr.rel (%p231) target = $region36
      $region35: #{up_conv_forward.2} parent=31 // pred_region
        %vm234 = vcmask 7168
        %235 = vst.msk [vmem:[%s225] sm:$0xff] %vm234, 0.0
        %236 = vst.msk [vmem:[%s229] sm:$0xff] %vm234, 0.0
      $region36: #{up_conv_forward.2} parent=31 // pred_fallthru
        _
      %v237 = vld [vmem:[%s1] sm:$0xff]
      %v238 = vld [vmem:[%s221] sm:$0xf]
      %v239 = vld [vmem:[%s2] sm:$0xff]
      %241 = vset.pattern.permute.xlu0 0
      %242 = vperm.xlu0 %241, %v239
      %v243 = vpop.permute.xlu0 %242
      %vm245 = vcmask 31744
      %v247 = vsel %vm245, %v237, 0
      %vm249 = vcmask 1043456
      %v251 = vsel %vm249, %v238, 0
      %253 = vmatprep.subr.mxu0 0.0
      %254 = vmatpush1.msra.mxu0 0.0
      %255 = vmatprep.subr.mxu0 0.0
      %256 = vmatpush1.msra.mxu0 0.0
      %257 = vmatprep.subr.mxu0 0.0
      %258 = vmatpush1.msra.mxu0 0.0
      %259 = vmatprep.subr.mxu0 0.0
      %260 = vmatpush1.msra.mxu0 0.0
      %261 = vmatprep.subr.mxu0 0.0
      %262 = vmatpush1.msra.mxu0 0.0
      %263 = vmatprep.subr.mxu0 0.0
      %264 = vmatpush1.msra.mxu0 0.0
      %265 = vmatprep.subr.mxu0 0.0
      %266 = vmatpush1.msra.mxu0 0.0
      %267 = vmatprep.subr.mxu0 0.0
      %268 = vmatpush1.msra.mxu0 0.0
      %269 = vmatprep.subr.mxu0 0.0
      %270 = vmatpush1.msra.mxu0 0.0
      %271 = vmatprep.subr.mxu0 0.0
      %272 = vmatpush1.msra.mxu0 0.0
      %273 = vmatprep.subr.mxu0 0.0
      %274 = vmatpush1.msra.mxu0 0.0
      %275 = vmatprep.subr.mxu0 0.0
      %276 = vmatpush1.msra.mxu0 0.0
      %277 = vmatprep.subr.mxu0 0.0
      %278 = vmatpush1.msra.mxu0 0.0
      %279 = vmatprep.subr.mxu0 0.0
      %280 = vmatpush1.msra.mxu0 0.0
      %281 = vmatprep.subr.mxu0 0.0
      %282 = vmatpush1.msra.mxu0 0.0
      %283 = vmatprep.subr.mxu0 0.0
      %284 = vmatpush1.msra.mxu0 %v251
      %285 = vmatprep.subr.mxu0 0.0
      %286 = vmatpush2.msra.mxu0 0.0
      %287 = vmatprep.subr.mxu0 0.0
      %288 = vmatpush2.msra.mxu0 0.0
      %289 = vmatprep.subr.mxu0 0.0
      %290 = vmatpush2.msra.mxu0 0.0
      %291 = vmatprep.subr.mxu0 0.0
      %292 = vmatpush2.msra.mxu0 0.0
      %293 = vmatprep.subr.mxu0 0.0
      %294 = vmatpush2.msra.mxu0 0.0
      %295 = vmatprep.subr.mxu0 0.0
      %296 = vmatpush2.msra.mxu0 0.0
      %297 = vmatprep.subr.mxu0 0.0
      %298 = vmatpush2.msra.mxu0 0.0
      %299 = vmatprep.subr.mxu0 0.0
      %300 = vmatpush2.msra.mxu0 0.0
      %301 = vmatprep.subr.mxu0 0.0
      %302 = vmatpush2.msra.mxu0 0.0
      %303 = vmatprep.subr.mxu0 0.0
      %304 = vmatpush2.msra.mxu0 0.0
      %305 = vmatprep.subr.mxu0 0.0
      %306 = vmatpush2.msra.mxu0 0.0
      %307 = vmatprep.subr.mxu0 0.0
      %308 = vmatpush2.msra.mxu0 0.0
      %309 = vmatprep.subr.mxu0 0.0
      %310 = vmatpush2.msra.mxu0 0.0
      %311 = vmatprep.subr.mxu0 0.0
      %312 = vmatpush2.msra.mxu0 0.0
      %313 = vmatprep.subr.mxu0 0.0
      %314 = vmatpush2.msra.mxu0 0.0
      %315 = vmatprep.subr.mxu0 0.0
      %316 = vmatpush2.msra.mxu0 0.0
      %317 = vmatprep.mubr.f32.mxu0 0.0
      %318 = vmatmul.mubr.f32.gmra.mxu0 %v247
      %v319 = vpop.f32.mrf.mxu0
      %v320 = vadd.f32 %v243, %v319
      %v321 = vpop.f32.mrf.mxu0
      %322 = vdwg.mxu0
      %v323 = vmax.f32 %v320, 0.0
      %v324 = vld [vmem:[%s225] sm:$0xff]
      %325 = vadd.xlane.f32.xlu0 %v323
      %v326 = vpop.xlane.xlu0 %325
      %v327 = vadd.f32 %v324, %v326
      %vm328 = vcmask 7168
      %329 = vst.msk [vmem:[%s225] sm:$0xff] %vm328, %v327
      %v330 = vld [vmem:[%s229] sm:$0xff]
      %v331 = vmul.f32 %v323, %v323
      %332 = vadd.xlane.f32.xlu0 %v331
      %v333 = vpop.xlane.xlu0 %332
      %v334 = vadd.f32 %v330, %v333
      %335 = vst.msk [vmem:[%s229] sm:$0xff] %vm328, %v334
      %p336 = scmp.lt.s32.totalorder %s20, 1
      %s337 = scalar_select %p336, %s20, 1
      %s338 = smul.addr %s337, 8
      %s339 = scalar_lea.vmem %s3, %s338
      %p340 = scmp.lt.s32.totalorder %s20, 1
      %s341 = scalar_select %p340, %s20, 1
      %s342 = smul.addr %s341, 8
      %s343 = scalar_lea.vmem %s4, %s342
      // Predicated region
      $region37: #{up_conv_forward.2} parent=31 // pred_check
        %p344 = pneg %p116
      $region38: #{up_conv_forward.2} parent=31 // pred_check_branch
        %346 = sbr.rel (%p344) target = $region40
      $region39: #{up_conv_forward.2} parent=31 // pred_region
        _
      $region40: #{up_conv_forward.2} parent=31 // pred_fallthru
        _
      // Predicated region
      $region41: #{up_conv_forward.2} parent=31 // pred_check
        %p347 = pneg %p142
      $region42: #{up_conv_forward.2} parent=31 // pred_check_branch
        %349 = sbr.rel (%p347) target = $region44
      $region43: #{up_conv_forward.2} parent=31 // pred_region
        _
      $region44: #{up_conv_forward.2} parent=31 // pred_fallthru
        _
    $region32: #{up_conv_forward.2} parent=5 // pred_fallthru
      _
    %p350 = scmp.le.s32.totalorder 2, %s11
    // Predicated region
    $region45: #{up_conv_forward.2} parent=5 // pred_check
      %p351 = pneg %p350
    $region46: #{up_conv_forward.2} parent=5 // pred_check_branch
      %353 = sbr.rel (%p351) target = $region48
    $region47: #{up_conv_forward.2} parent=5 // pred_region
      %s354 = ssub.s32 %s11, 2
      // Predicated region
      $region49: #{up_conv_forward.2} parent=47 // pred_check
        %p355 = pneg %p122
      $region50: #{up_conv_forward.2} parent=47 // pred_check_branch
        %357 = sbr.rel (%p355) target = $region52
      $region51: #{up_conv_forward.2} parent=47 // pred_region
        %p358 = scmp.lt.s32.totalorder %s22, 1
        %s359 = scalar_select %p358, %s22, 1
        %s360 = smul.addr %s359, 8
        %s361 = scalar_lea.vmem %s3, %s360
      $region52: #{up_conv_forward.2} parent=47 // pred_fallthru
        _
      // Predicated region
      $region53: #{up_conv_forward.2} parent=47 // pred_check
        %p362 = pneg %p148
      $region54: #{up_conv_forward.2} parent=47 // pred_check_branch
        %364 = sbr.rel (%p362) target = $region56
      $region55: #{up_conv_forward.2} parent=47 // pred_region
        %p365 = scmp.lt.s32.totalorder %s22, 1
        %s366 = scalar_select %p365, %s22, 1
        %s367 = smul.addr %s366, 8
        %s368 = scalar_lea.vmem %s4, %s367
      $region56: #{up_conv_forward.2} parent=47 // pred_fallthru
        _
    $region48: #{up_conv_forward.2} parent=5 // pred_fallthru
      _
  $region6: #{up_conv_forward.2} parent=0 // loop_footer
    %s15 = sadd.s32 1, %s11
  $region7: #{up_conv_forward.2} parent=0 // loop_footer_branch
    %10 = sbr.rel target = $region3
  $region8: #{up_conv_forward.2} parent=0 // loop_exit
    _

</llo_original>
